<compile_context>
chip_gen: v5e
topology: v5e:2x2
jax: 0.10.0
libtpu: 0.0.40
codegen_flags: <defaults>
</compile_context>

<pallas_src>
import jax
import jax.numpy as jnp
from jax.experimental import pallas as pl
from jax.experimental.pallas import tpu as pltpu


def _identity_kernel(x_ref, o_ref):
    # Pure element-wise copy of the current VMEM tile.
    o_ref[...] = x_ref[...]


# 512 is a multiple of 32, so the sublane dim stays aligned even for packed
# dtypes (bf16 -> 16 rows/vreg, int8 -> 32 rows/vreg).  With a 1024-wide f32
# row this is ~2 MiB per tile; double-buffered in + out stays well under the
# 16 MiB (v5e) / 32 MiB (v6e, v7x) default scoped-VMEM limits.
_TILE_ROWS = 512


def _as_2d(x):
    """Flatten to 2D with a lane-dense (multiple-of-128) last dim when possible."""
    total = x.size
    if x.ndim == 0:
        return x.reshape(1, 1)
    for c in (1024, 512, 256, 128):
        if total % c == 0:
            return x.reshape(total // c, c)
    if x.ndim == 1:
        return x.reshape(1, total)
    # Awkward total size: fall back to (rows, last_dim); block covers the full
    # last dim so the (8,128) rule is still satisfied.
    return x.reshape(-1, x.shape[-1])


@jax.jit
def identity(x):
    """Pallas implementation of Identity.forward: returns x unchanged."""
    if x.size == 0:
        return x  # nothing to copy

    orig_shape = x.shape
    x2 = _as_2d(x)
    R, C = x2.shape

    if R <= _TILE_ROWS:
        tile_r = R          # full extent along the row dim (always legal)
        grid_r = 1
    else:
        tile_r = _TILE_ROWS
        grid_r = pl.cdiv(R, tile_r)   # partial last tile is masked by Pallas

    nbytes = x.size * x.dtype.itemsize
    out2 = pl.pallas_call(
        _identity_kernel,
        out_shape=jax.ShapeDtypeStruct((R, C), x.dtype),
        grid=(grid_r,),
        in_specs=[pl.BlockSpec((tile_r, C), lambda i: (i, 0))],
        out_specs=pl.BlockSpec((tile_r, C), lambda i: (i, 0)),
        # Output aliases the input buffer: when the caller donates x this is a
        # true no-op in HBM; otherwise XLA inserts at most one copy.
        input_output_aliases={0: 0},
        compiler_params=pltpu.CompilerParams(
            dimension_semantics=("parallel",),
        ),
        cost_estimate=pl.CostEstimate(
            flops=0, transcendentals=0, bytes_accessed=2 * nbytes
        ),
    )(x2)

    return out2.reshape(orig_shape)


def _check(x):
    y = identity(x)
    jax.block_until_ready(y)
    assert y.shape == x.shape, (y.shape, x.shape)
    assert y.dtype == x.dtype, (y.dtype, x.dtype)
    assert bool(jnp.all(y == x))


if __name__ == "__main__":
    key = jax.random.PRNGKey(0)
    k0, k1, k2 = jax.random.split(key, 3)

    # Small NCHW input consistent with a conv-style module: batch=2, C=4, H=W=16.
    x = jax.random.normal(k0, (2, 4, 16, 16), dtype=jnp.float32)
    _check(x)

    # Larger input that exercises the multi-tile (grid > 1) path.
    x_big = jax.random.normal(k1, (8, 16, 128, 128), dtype=jnp.bfloat16)
    _check(x_big)

    # Awkward size that exercises the non-lane-dense fallback path.
    x_odd = jax.random.normal(k2, (3, 5, 7), dtype=jnp.float32)
    _check(x_odd)

    print("KERNEL_OK")
</pallas_src>

<mosaic_0001>
module attributes {stable_mosaic.version = 11 : i64} {
  func.func @_identity_kernel(%arg0: i32, %arg1: memref<2x1024xf32, #tpu.memory_space<vmem>>, %arg2: memref<2x1024xf32, #tpu.memory_space<vmem>>) attributes {dimension_semantics = [#tpu.dimension_semantics<parallel>], iteration_bounds = array<i64: 1>, scalar_prefetch = 0 : i64, scratch_operands = 0 : i64, tpu.core_type = #tpu.core_type<tc>, window_params = [{transform_indices = @transform_0, window_bounds = array<i64: 2, 1024>}, {transform_indices = @transform_1, window_bounds = array<i64: 2, 1024>}]} {
    %c0 = arith.constant 0 : index
    %c0_0 = arith.constant 0 : index
    %0 = vector.load %arg1[%c0, %c0_0] : memref<2x1024xf32, #tpu.memory_space<vmem>>, vector<2x1024xf32>
    %c0_1 = arith.constant 0 : index
    %c0_2 = arith.constant 0 : index
    %1 = vector.load %arg2[%c0_1, %c0_2] : memref<2x1024xf32, #tpu.memory_space<vmem>>, vector<2x1024xf32>
    tpu.vector_store %arg2[%c0_1, %c0_2], %0 {strides = array<i32>} : memref<2x1024xf32, #tpu.memory_space<vmem>>, vector<2x1024xf32>,
    return
  }
  func.func @transform_0(%arg0: i32) -> (i32, i32) {
    %c0_i32 = arith.constant 0 : i32
    %c0_i32_0 = arith.constant 0 : i32
    return %arg0, %c0_i32 : i32, i32
  }
  func.func @transform_1(%arg0: i32) -> (i32, i32) {
    %c0_i32 = arith.constant 0 : i32
    %c0_i32_0 = arith.constant 0 : i32
    return %arg0, %c0_i32 : i32, i32
  }
}

</mosaic_0001>

<llo_original>
// kernel: identity.1
$region0: #{identity.1}
  #allocation0 [shape = 'u32[]', space=smem, size = 0x4, offset = 0x4, fixed_abs, tag = 'smem constant byte address 0x4 - core index']
  #allocation1 [shape = 'u32[72,128]{1,0:T(1,128)}', space=vmem, size = 0x9000, scoped, tag = 'internal scratch']
  %s0 = inlined_call_operand.vmem [shape: f32[2,1024], index: 0, kind: input, shape index: {}, may-alias: {0,1}]
  %s1 = inlined_call_operand.vmem [shape: f32[2,1024], index: 1, kind: output, shape index: {}, may-alias: {0,1}]
  %s2 = sld [smem:[#allocation0]]
  $region14: #{identity.1} parent=0
    _
  %s4 = ssub.s32 1, %s2
  %s5 = scalar_select 0, %s4, %s2
  // Predicated region
  $region2: #{identity.1} parent=0 // pred_check
    _
  $region3: #{identity.1} parent=0 // pred_check_branch
    %7 = sbr.rel (0) target = $region5
  $region4: #{identity.1} parent=0 // pred_region
    _
  $region5: #{identity.1} parent=0 // pred_fallthru
    _
  %v8 = vld [vmem:[%s0] sm:$0xff]
  %v9 = vld [vmem:[%s0 + $0x8] sm:$0xff]
  %10 = vst [vmem:[%s1] sm:$0xff] %v8
  %11 = vst [vmem:[%s1 + $0x8] sm:$0xff] %v9
  // Predicated region
  $region6: #{identity.1} parent=0 // pred_check
    _
  $region7: #{identity.1} parent=0 // pred_check_branch
    %13 = sbr.rel (0) target = $region9
  $region8: #{identity.1} parent=0 // pred_region
    _
  $region9: #{identity.1} parent=0 // pred_fallthru
    _
  // Predicated region
  $region10: #{identity.1} parent=0 // pred_check
    _
  $region11: #{identity.1} parent=0 // pred_check_branch
    %15 = sbr.rel (0) target = $region13
  $region12: #{identity.1} parent=0 // pred_region
    _
  $region13: #{identity.1} parent=0 // pred_fallthru
    _

</llo_original>
